<compile_context>
chip_gen: v5e
topology: v5e:2x2
jax: 0.10.0
libtpu: 0.0.40
codegen_flags: <defaults>
</compile_context>

<pallas_src>
import functools

import jax
import jax.numpy as jnp
from jax.experimental import pallas as pl
from jax.experimental.pallas import tpu as pltpu


def _cdiv(a, b):
    return (a + b - 1) // b


def _round_up(n, m):
    return _cdiv(n, m) * m


def _vmem_capacity_bytes():
    try:
        return int(pltpu.get_tpu_info().vmem_capacity_bytes)
    except Exception:  # older jax / attribute drift -> conservative v7x value
        return 64 * 2**20


def _choose_tm(M, tm_hint):
    # MXU-row aligned: 256 covers v6e/v7x (2x256^2 MXU) and is a multiple of
    # v5e's 128 and of the 8-sublane granule.
    tm = max(256, _round_up(tm_hint, 256))
    if _cdiv(M, tm) < 2 and M > 8:
        # Keep >=2 M grid steps so the "parallel" axis can shard across v7x's 2 TCs.
        tm = _round_up(_cdiv(M, 2), 8)
    return max(8, min(tm, _round_up(M, 8)))


def _choose_tk(d_ff, tk_hint):
    if d_ff <= tk_hint:
        return d_ff                      # single reduction step, block == full d_ff
    return max(128, (min(tk_hint, d_ff) // 128) * 128)   # lane-dense slab


def _vmem_estimate(tm, tk, d_model, isz_x, isz_w1, isz_w2):
    return (2 * 2 * tm * d_model * isz_x          # x + out tiles (double-buffered)
            + 2 * d_model * tk * isz_w1           # w1 slabs (double-buffered)
            + 2 * tk * 4                          # b1 slabs (f32)
            + 2 * tk * d_model * isz_w2           # w2 slabs (double-buffered)
            + 6 * d_model * 4                     # b2 / gamma / beta (f32)
            + tm * d_model * 4                    # f32 accumulator scratch
            + tm * tk * (4 + isz_w2)              # f32 h + its cast copy for dot #2
            + 2 * tm * d_model * 4                # f32 residual / LN temporaries
            + (2 << 20))                          # compiler slack


def _ffn_kernel(x_ref, w1_ref, b1_ref, w2_ref, b2_ref, g_ref, beta_ref,
                o_ref, acc_ref, *, eps):
    # x_ref:   (tm, d_model)      token tile (resident across the k axis)
    # w1_ref:  (d_model, tk_ff)   conv1 weight slab (matmul form)
    # b1_ref:  (1, tk_ff)         f32
    # w2_ref:  (tk_ff, d_model)   conv2 weight slab (matmul form)
    # b2/g/beta: (1, d_model)     f32
    # acc_ref: (tm, d_model)      f32 accumulator scratch (persists across k)
    k = pl.program_id(1)

    @pl.when(k == 0)
    def _init():
        acc_ref[...] = jnp.zeros_like(acc_ref)

    # conv1 (1x1) + ReLU on this d_ff slab. Cast x to the weights' dtype so bf16
    # weights keep the fast bf16 MXU path (no implicit promotion back to f32);
    # accumulate in f32 via preferred_element_type.
    x = x_ref[...]
    h = jnp.dot(x.astype(w1_ref.dtype), w1_ref[...],
                preferred_element_type=jnp.float32)
    h = jnp.maximum(h + b1_ref[...], 0.0)

    # conv2 (1x1): partial contribution of this d_ff slab, f32 accumulation.
    acc_ref[...] += jnp.dot(h.astype(w2_ref.dtype), w2_ref[...],
                            preferred_element_type=jnp.float32)

    @pl.when(k == pl.num_programs(1) - 1)
    def _finalize():
        out = acc_ref[...] + b2_ref[...]
        y = out + x_ref[...].astype(jnp.float32)          # residual add in f32
        mean = jnp.mean(y, axis=-1, keepdims=True)
        var = jnp.mean((y - mean) * (y - mean), axis=-1, keepdims=True)
        y_norm = (y - mean) * jax.lax.rsqrt(var + eps)
        o_ref[...] = (y_norm * g_ref[...] + beta_ref[...]).astype(o_ref.dtype)


def poswise_ffn(x, w1, b1, w2, b2, gamma, beta, *, eps=1e-5, tm=512, tk_ff=2048):
    """x: (B, S, d_model); w1: (d_model, d_ff); w2: (d_ff, d_model).

    Pass bf16 w1/w2 for the fast-MXU production path; LN stats stay f32.
    """
    B, S, d_model = x.shape
    d_ff = w1.shape[1]
    M = B * S
    isz = lambda a: jnp.dtype(a.dtype).itemsize

    # ---- tile selection (VMEM-aware, generation-aware cap) -------------------
    cap = int(0.75 * _vmem_capacity_bytes())   # headroom for pipeline scratch/sems
    tm_eff = _choose_tm(M, tm)
    tk_eff = _choose_tk(d_ff, tk_ff)
    fits = lambda tm_, tk_: _vmem_estimate(
        tm_, tk_, d_model, isz(x), isz(w1), isz(w2)) <= cap
    while not fits(tm_eff, tk_eff) and tk_eff > 512:     # trade d_ff slab first
        tk_eff = max(512, _round_up(tk_eff // 2, 128))
    while not fits(tm_eff, tk_eff) and tm_eff > 256:     # then shrink token tile
        tm_eff = max(256, _round_up(tm_eff // 2, 256))

    # ---- d_ff reduction axis: zero-pad weights so the last slab contributes 0 --
    n_k = _cdiv(d_ff, tk_eff)
    d_ff_p = n_k * tk_eff
    if d_ff_p != d_ff:
        pad = d_ff_p - d_ff          # ReLU(0 + 0) @ 0-rows == 0 -> exact
        w1 = jnp.pad(w1, ((0, 0), (0, pad)))
        b1 = jnp.pad(b1, ((0, pad),))
        w2 = jnp.pad(w2, ((0, pad), (0, 0)))

    n_m = _cdiv(M, tm_eff)           # partial last M block is store-masked by Pallas
    grid = (n_m, n_k)

    x2 = x.reshape(M, d_model)
    b1_2 = b1.reshape(1, d_ff_p).astype(jnp.float32)
    b2_2 = b2.reshape(1, d_model).astype(jnp.float32)
    g_2 = gamma.reshape(1, d_model).astype(jnp.float32)
    be_2 = beta.reshape(1, d_model).astype(jnp.float32)

    kernel = functools.partial(_ffn_kernel, eps=eps)

    est = _vmem_estimate(tm_eff, tk_eff, d_model, isz(x), isz(w1), isz(w2))
    vmem_limit = int(min(cap, max(32 * 2**20, est)))

    # Advisory cost estimate for XLA's scheduler around this custom call.
    w_fetches = 1 if n_k == 1 else n_m     # constant-index weights stay resident
    flops = 4 * M * d_model * d_ff + 10 * M * d_model
    bytes_accessed = int(2 * M * d_model * isz(x)
                         + w_fetches * (d_model * d_ff_p * isz(w1)
                                        + d_ff_p * d_model * isz(w2))
                         + (d_ff_p + 3 * d_model) * 4)

    out = pl.pallas_call(
        kernel,
        out_shape=jax.ShapeDtypeStruct((M, d_model), x.dtype),
        grid_spec=pltpu.PrefetchScalarGridSpec(
            num_scalar_prefetch=0,
            grid=grid,
            in_specs=[
                pl.BlockSpec((tm_eff, d_model), lambda i, k: (i, 0)),   # x tile
                pl.BlockSpec((d_model, tk_eff), lambda i, k: (0, k)),   # w1 slab
                pl.BlockSpec((1, tk_eff), lambda i, k: (0, k)),         # b1 slab
                pl.BlockSpec((tk_eff, d_model), lambda i, k: (k, 0)),   # w2 slab
                pl.BlockSpec((1, d_model), lambda i, k: (0, 0)),        # b2
                pl.BlockSpec((1, d_model), lambda i, k: (0, 0)),        # gamma
                pl.BlockSpec((1, d_model), lambda i, k: (0, 0)),        # beta
            ],
            out_specs=pl.BlockSpec((tm_eff, d_model), lambda i, k: (i, 0)),
            scratch_shapes=[pltpu.VMEM((tm_eff, d_model), jnp.float32)],
        ),
        compiler_params=pltpu.CompilerParams(
            dimension_semantics=("parallel", "arbitrary"),   # M sharded, d_ff reduced
            vmem_limit_bytes=vmem_limit,
        ),
        cost_estimate=pl.CostEstimate(
            flops=flops, transcendentals=M, bytes_accessed=bytes_accessed),
    )(x2, w1, b1_2, w2, b2_2, g_2, be_2)

    return out.reshape(B, S, d_model)


def reference_ffn(x, w1, b1, w2, b2, gamma, beta, eps=1e-5):
    h = jnp.maximum(jnp.einsum("bsd,df->bsf", x, w1) + b1, 0.0)
    out = jnp.einsum("bsf,fd->bsd", h, w2) + b2
    y = out + x
    mean = jnp.mean(y, axis=-1, keepdims=True)
    var = jnp.mean((y - mean) ** 2, axis=-1, keepdims=True)
    return (y - mean) / jnp.sqrt(var + eps) * gamma + beta


if __name__ == "__main__":
    # cfg: d_model=32, d_ff=64, dropout ignored (inference identity).
    B, S, d_model, d_ff = 2, 8, 32, 64

    key = jax.random.PRNGKey(0)
    kx, kw1, kb1, kw2, kb2 = jax.random.split(key, 5)

    x = jax.random.normal(kx, (B, S, d_model), dtype=jnp.float32)

    # Conv1d(kernel_size=1) weights: PyTorch (out, in, 1) -> matmul form (in, out).
    # Deterministic random init (synthetic, not a checkpoint).
    w1 = jax.random.normal(kw1, (d_model, d_ff), dtype=jnp.float32) * 0.05
    b1 = jax.random.normal(kb1, (d_ff,), dtype=jnp.float32) * 0.05
    w2 = jax.random.normal(kw2, (d_ff, d_model), dtype=jnp.float32) * 0.05
    b2 = jax.random.normal(kb2, (d_model,), dtype=jnp.float32) * 0.05
    gamma = jnp.ones((d_model,), dtype=jnp.float32)   # LayerNorm default init
    beta = jnp.zeros((d_model,), dtype=jnp.float32)

    ref = reference_ffn(x, w1, b1, w2, b2, gamma, beta)

    # f32 weights: exact path, strict tolerance.
    out = jax.block_until_ready(poswise_ffn(x, w1, b1, w2, b2, gamma, beta))
    assert out.shape == (B, S, d_model)
    assert jnp.allclose(out, ref, atol=1e-5, rtol=1e-5), "f32 mismatch vs reference"

    # bf16 weights (recommended production config): bf16 MXU, f32 accumulation/LN.
    out_bf16 = jax.block_until_ready(
        poswise_ffn(x, w1.astype(jnp.bfloat16), b1,
                    w2.astype(jnp.bfloat16), b2, gamma, beta))
    assert jnp.allclose(out_bf16.astype(jnp.float32), ref,
                        atol=5e-2, rtol=5e-2), "bf16 mismatch vs reference"

    print("KERNEL_OK")
</pallas_src>

<mosaic_0001>
module attributes {stable_mosaic.version = 11 : i64} {
  func.func @_ffn_kernel(%arg0: i32, %arg1: i32, %arg2: memref<8x32xf32, #tpu.memory_space<vmem>>, %arg3: memref<32x64xf32, #tpu.memory_space<vmem>>, %arg4: memref<1x64xf32, #tpu.memory_space<vmem>>, %arg5: memref<64x32xf32, #tpu.memory_space<vmem>>, %arg6: memref<1x32xf32, #tpu.memory_space<vmem>>, %arg7: memref<1x32xf32, #tpu.memory_space<vmem>>, %arg8: memref<1x32xf32, #tpu.memory_space<vmem>>, %arg9: memref<8x32xf32, #tpu.memory_space<vmem>>, %arg10: memref<8x32xf32, #tpu.memory_space<vmem>>) attributes {dimension_semantics = [#tpu.dimension_semantics<parallel>, #tpu.dimension_semantics<arbitrary>], iteration_bounds = array<i64: 2, 1>, scalar_prefetch = 0 : i64, scratch_operands = 1 : i64, tpu.core_type = #tpu.core_type<tc>, window_params = [{transform_indices = @transform_0, window_bounds = array<i64: 8, 32>}, {transform_indices = @transform_1, window_bounds = array<i64: 32, 64>}, {transform_indices = @transform_2, window_bounds = array<i64: 1, 64>}, {transform_indices = @transform_3, window_bounds = array<i64: 64, 32>}, {pipeline_mode = #tpu.pipeline_mode<synchronous>, transform_indices = @transform_4, window_bounds = array<i64: 1, 32>}, {pipeline_mode = #tpu.pipeline_mode<synchronous>, transform_indices = @transform_5, window_bounds = array<i64: 1, 32>}, {pipeline_mode = #tpu.pipeline_mode<synchronous>, transform_indices = @transform_6, window_bounds = array<i64: 1, 32>}, {transform_indices = @transform_7, window_bounds = array<i64: 8, 32>}]} {
    %c0_i32 = arith.constant 0 : i32
    %0 = arith.cmpi eq, %arg1, %c0_i32 : i32
    %1 = arith.extui %0 : i1 to i32
    %c0_i32_0 = arith.constant 0 : i32
    %2 = arith.cmpi ne, %1, %c0_i32_0 : i32
    scf.if %2 {
      %cst_16 = arith.constant 0.000000e+00 : f32
      %19 = vector.broadcast %cst_16 : f32 to vector<8x32xf32>
      %c0_17 = arith.constant 0 : index
      %c0_18 = arith.constant 0 : index
      %20 = vector.load %arg10[%c0_17, %c0_18] : memref<8x32xf32, #tpu.memory_space<vmem>>, vector<8x32xf32>
      tpu.vector_store %arg10[%c0_17, %c0_18], %19 {strides = array<i32>} : memref<8x32xf32, #tpu.memory_space<vmem>>, vector<8x32xf32>,
    } else {
    }
    %c0 = arith.constant 0 : index
    %c0_1 = arith.constant 0 : index
    %3 = vector.load %arg2[%c0, %c0_1] : memref<8x32xf32, #tpu.memory_space<vmem>>, vector<8x32xf32>
    %c0_2 = arith.constant 0 : index
    %c0_3 = arith.constant 0 : index
    %4 = vector.load %arg3[%c0_2, %c0_3] : memref<32x64xf32, #tpu.memory_space<vmem>>, vector<32x64xf32>
    %cst = arith.constant dense<0.000000e+00> : vector<8x64xf32>
    %5 = tpu.matmul %3, %4, %cst {dimension_numbers = #tpu.dot_dimension_numbers<[1], [0], [0], [1], [0, 0, 1, 1], [], []>} : vector<8x32xf32>, vector<32x64xf32>, vector<8x64xf32> -> vector<8x64xf32>
    %c0_4 = arith.constant 0 : index
    %c0_5 = arith.constant 0 : index
    %6 = vector.load %arg4[%c0_4, %c0_5] : memref<1x64xf32, #tpu.memory_space<vmem>>, vector<1x64xf32>
    %7 = vector.broadcast %6 : vector<1x64xf32> to vector<8x64xf32>
    %8 = arith.addf %5, %7 : vector<8x64xf32>
    %cst_6 = arith.constant 0.000000e+00 : f32
    %9 = vector.broadcast %cst_6 : f32 to vector<8x64xf32>
    %10 = arith.maximumf %8, %9 : vector<8x64xf32>
    %c0_7 = arith.constant 0 : index
    %c0_8 = arith.constant 0 : index
    %11 = vector.load %arg10[%c0_7, %c0_8] : memref<8x32xf32, #tpu.memory_space<vmem>>, vector<8x32xf32>
    %c0_9 = arith.constant 0 : index
    %c0_10 = arith.constant 0 : index
    %12 = vector.load %arg5[%c0_9, %c0_10] : memref<64x32xf32, #tpu.memory_space<vmem>>, vector<64x32xf32>
    %cst_11 = arith.constant dense<0.000000e+00> : vector<8x32xf32>
    %13 = tpu.matmul %10, %12, %cst_11 {dimension_numbers = #tpu.dot_dimension_numbers<[1], [0], [0], [1], [0, 0, 1, 1], [], []>} : vector<8x64xf32>, vector<64x32xf32>, vector<8x32xf32> -> vector<8x32xf32>
    %14 = arith.addf %11, %13 : vector<8x32xf32>
    %c0_12 = arith.constant 0 : index
    %c0_13 = arith.constant 0 : index
    %15 = vector.load %arg10[%c0_12, %c0_13] : memref<8x32xf32, #tpu.memory_space<vmem>>, vector<8x32xf32>
    tpu.vector_store %arg10[%c0_12, %c0_13], %14 {strides = array<i32>} : memref<8x32xf32, #tpu.memory_space<vmem>>, vector<8x32xf32>,
    %c0_i32_14 = arith.constant 0 : i32
    %16 = arith.cmpi eq, %arg1, %c0_i32_14 : i32
    %17 = arith.extui %16 : i1 to i32
    %c0_i32_15 = arith.constant 0 : i32
    %18 = arith.cmpi ne, %17, %c0_i32_15 : i32
    scf.if %18 {
      %c0_16 = arith.constant 0 : index
      %c0_17 = arith.constant 0 : index
      %19 = vector.load %arg10[%c0_16, %c0_17] : memref<8x32xf32, #tpu.memory_space<vmem>>, vector<8x32xf32>
      %c0_18 = arith.constant 0 : index
      %c0_19 = arith.constant 0 : index
      %20 = vector.load %arg6[%c0_18, %c0_19] : memref<1x32xf32, #tpu.memory_space<vmem>>, vector<1x32xf32>
      %21 = vector.broadcast %20 : vector<1x32xf32> to vector<8x32xf32>
      %22 = arith.addf %19, %21 : vector<8x32xf32>
      %c0_20 = arith.constant 0 : index
      %c0_21 = arith.constant 0 : index
      %23 = vector.load %arg2[%c0_20, %c0_21] : memref<8x32xf32, #tpu.memory_space<vmem>>, vector<8x32xf32>
      %24 = arith.addf %22, %23 : vector<8x32xf32>
      %cst_22 = arith.constant dense<0.000000e+00> : vector<8xf32>
      %25 = vector.multi_reduction <add>, %24, %cst_22 [1] : vector<8x32xf32> to vector<8xf32>
      %26 = vector.shape_cast %25 : vector<8xf32> to vector<8x1xf32>
      %cst_23 = arith.constant 3.200000e+01 : f32
      %27 = vector.broadcast %cst_23 : f32 to vector<8x1xf32>
      %28 = arith.divf %26, %27 : vector<8x1xf32>
      %29 = vector.broadcast %28 : vector<8x1xf32> to vector<8x32xf32>
      %30 = arith.subf %24, %29 : vector<8x32xf32>
      %31 = vector.broadcast %28 : vector<8x1xf32> to vector<8x32xf32>
      %32 = arith.subf %24, %31 : vector<8x32xf32>
      %33 = arith.mulf %30, %32 : vector<8x32xf32>
      %cst_24 = arith.constant dense<0.000000e+00> : vector<8xf32>
      %34 = vector.multi_reduction <add>, %33, %cst_24 [1] : vector<8x32xf32> to vector<8xf32>
      %35 = vector.shape_cast %34 : vector<8xf32> to vector<8x1xf32>
      %cst_25 = arith.constant 3.200000e+01 : f32
      %36 = vector.broadcast %cst_25 : f32 to vector<8x1xf32>
      %37 = arith.divf %35, %36 : vector<8x1xf32>
      %38 = vector.broadcast %28 : vector<8x1xf32> to vector<8x32xf32>
      %39 = arith.subf %24, %38 : vector<8x32xf32>
      %cst_26 = arith.constant 9.99999974E-6 : f32
      %40 = vector.broadcast %cst_26 : f32 to vector<8x1xf32>
      %41 = arith.addf %37, %40 : vector<8x1xf32>
      %42 = math.rsqrt %41 : vector<8x1xf32>
      %43 = vector.broadcast %42 : vector<8x1xf32> to vector<8x32xf32>
      %44 = arith.mulf %39, %43 : vector<8x32xf32>
      %c0_27 = arith.constant 0 : index
      %c0_28 = arith.constant 0 : index
      %45 = vector.load %arg7[%c0_27, %c0_28] : memref<1x32xf32, #tpu.memory_space<vmem>>, vector<1x32xf32>
      %46 = vector.broadcast %45 : vector<1x32xf32> to vector<8x32xf32>
      %47 = arith.mulf %44, %46 : vector<8x32xf32>
      %c0_29 = arith.constant 0 : index
      %c0_30 = arith.constant 0 : index
      %48 = vector.load %arg8[%c0_29, %c0_30] : memref<1x32xf32, #tpu.memory_space<vmem>>, vector<1x32xf32>
      %49 = vector.broadcast %48 : vector<1x32xf32> to vector<8x32xf32>
      %50 = arith.addf %47, %49 : vector<8x32xf32>
      %c0_31 = arith.constant 0 : index
      %c0_32 = arith.constant 0 : index
      %51 = vector.load %arg9[%c0_31, %c0_32] : memref<8x32xf32, #tpu.memory_space<vmem>>, vector<8x32xf32>
      tpu.vector_store %arg9[%c0_31, %c0_32], %50 {strides = array<i32>} : memref<8x32xf32, #tpu.memory_space<vmem>>, vector<8x32xf32>,
    } else {
    }
    return
  }
  func.func @transform_0(%arg0: i32, %arg1: i32) -> (i32, i32) {
    %c0_i32 = arith.constant 0 : i32
    %c0_i32_0 = arith.constant 0 : i32
    return %arg0, %c0_i32 : i32, i32
  }
  func.func @transform_1(%arg0: i32, %arg1: i32) -> (i32, i32) {
    %c0_i32 = arith.constant 0 : i32
    %c0_i32_0 = arith.constant 0 : i32
    return %c0_i32, %arg1 : i32, i32
  }
  func.func @transform_2(%arg0: i32, %arg1: i32) -> (i32, i32) {
    %c0_i32 = arith.constant 0 : i32
    %c0_i32_0 = arith.constant 0 : i32
    return %c0_i32, %arg1 : i32, i32
  }
  func.func @transform_3(%arg0: i32, %arg1: i32) -> (i32, i32) {
    %c0_i32 = arith.constant 0 : i32
    %c0_i32_0 = arith.constant 0 : i32
    return %arg1, %c0_i32 : i32, i32
  }
  func.func @transform_4(%arg0: i32, %arg1: i32) -> (i32, i32) {
    %c0_i32 = arith.constant 0 : i32
    %c0_i32_0 = arith.constant 0 : i32
    %c0_i32_1 = arith.constant 0 : i32
    return %c0_i32, %c0_i32_0 : i32, i32
  }
  func.func @transform_5(%arg0: i32, %arg1: i32) -> (i32, i32) {
    %c0_i32 = arith.constant 0 : i32
    %c0_i32_0 = arith.constant 0 : i32
    %c0_i32_1 = arith.constant 0 : i32
    return %c0_i32, %c0_i32_0 : i32, i32
  }
  func.func @transform_6(%arg0: i32, %arg1: i32) -> (i32, i32) {
    %c0_i32 = arith.constant 0 : i32
    %c0_i32_0 = arith.constant 0 : i32
    %c0_i32_1 = arith.constant 0 : i32
    return %c0_i32, %c0_i32_0 : i32, i32
  }
  func.func @transform_7(%arg0: i32, %arg1: i32) -> (i32, i32) {
    %c0_i32 = arith.constant 0 : i32
    %c0_i32_0 = arith.constant 0 : i32
    return %arg0, %c0_i32 : i32, i32
  }
}

</mosaic_0001>

<llo_original>
// kernel: tpu_custom_call.1
$region0: #{tpu_custom_call.1}
  #allocation0 [shape = 'u32[]', space=smem, size = 0x4, offset = 0x4, fixed_abs, tag = 'smem constant byte address 0x4 - core index']
  #allocation1 [shape = 'u32[72,128]{1,0:T(1,128)}', space=vmem, size = 0x9000, scoped, tag = 'internal scratch']
  #allocation2 [shape = 'f32[8,32]{1,0:T(8,128)}', space=vmem, size = 0x1000, scoped, tag = 'scratch operand']
  %s0 = inlined_call_operand.vmem [shape: f32[16,32], index: 0, kind: input, shape index: {}]
  %s1 = inlined_call_operand.vmem [shape: f32[32,64], index: 1, kind: input, shape index: {}]
  %s2 = inlined_call_operand.vmem [shape: f32[1,64], index: 2, kind: input, shape index: {}]
  %s3 = inlined_call_operand.vmem [shape: f32[64,32], index: 3, kind: input, shape index: {}]
  %s4 = inlined_call_operand.vmem [shape: f32[1,32], index: 4, kind: input, shape index: {}]
  %s5 = inlined_call_operand.vmem [shape: f32[1,32], index: 5, kind: input, shape index: {}]
  %s6 = inlined_call_operand.vmem [shape: f32[1,32], index: 6, kind: input, shape index: {}]
  %s7 = inlined_call_operand.hbm [shape: f32[16,32], index: 7, kind: output, shape index: {}]
  %s8 = sld [smem:[#allocation0]]
  $region69: #{tpu_custom_call.1} parent=0
    _
  %s10 = ssub.s32 1, %s8
  %s11 = scalar_select 0, %s10, %s8
  $region1: #{tpu_custom_call.1} parent=0
    #allocation3 [shape = 'u8[8192]{0}', space=vmem, size = 0x2000, scoped, tag = 'output window, operand 0']
    #allocation4 [shape = 's32[2]{0}', space=sflag, size = 0x8, scoped, tag = 'scoped memory for tpu_custom_call.1']
    %12 = vsyncpa [#allocation4], 0
    %s13 = scalar_lea.sflag [#allocation4], 1
    %14 = vsyncpa %s13, 0
    loop: start=0, step=1, limit=4
    $region2: #{tpu_custom_call.1} parent=1 // loop_pre_header
      _
    $region3: #{tpu_custom_call.1} parent=1 // loop_header
      %s16 = sphi 0, %s20
      %p17 = scmp.ge.s32.totalorder %s16, 4
      %s23 = sphi 0, %s35
      %s24 = sphi 0, %s31
      %s25 = sphi 0, %s23
      %s26 = sphi 0, %s24
      %s27 = sphi 0, %s25
      %s28 = sphi 0, %s26
      %s38 = sphi 0, %s40
      %s41 = sphi 0, %s38
      %s42 = sphi 0, %s41
      %s58 = sphi 0, %s42
      %s64 = sphi 0, %s66
      %s67 = sphi 0, %s64
      %s68 = sphi 0, %s67
      %s84 = sphi 0, %s68
      %s90 = sphi 0, %s92
      %s93 = sphi 0, %s90
      %s94 = sphi 0, %s93
      %s110 = sphi 0, %s94
      %s116 = sphi 0, %s118
      %s119 = sphi 0, %s116
      %s120 = sphi 0, %s119
      %s136 = sphi 0, %s120
      %s140 = sphi 0, %s140
      %s142 = sphi 0, %s140
      %s143 = sphi 0, %s142
      %s157 = sphi 0, %s143
      %s161 = sphi 0, %s161
      %s163 = sphi 0, %s161
      %s164 = sphi 0, %s163
      %s178 = sphi 0, %s164
      %s182 = sphi 0, %s182
      %s184 = sphi 0, %s182
      %s185 = sphi 0, %s184
      %s199 = sphi 0, %s185
      %s205 = sphi 0, %s207
      %s208 = sphi 0, %s205
      %s209 = sphi 0, %s208
      %s225 = sphi 0, %s209
    $region4: #{tpu_custom_call.1} parent=1 // loop_header_branch
      %19 = sbr.rel (%p17) target = $region8
    $region5: #{tpu_custom_call.1} parent=1 // loop_body
      %s21 = ssub.s32 %s16, 1
      %s22 = ssub.s32 %s16, 2
      %s29 = sadd.s32 1, %s24
      %p30 = scmp.ge.s32.totalorder %s29, 1
      %s31 = scalar_select %p30, 0, %s29
      %s32 = sadd.s32 1, %s23
      %s33 = scalar_select %p30, %s32, %s23
      %p34 = scmp.ge.s32.totalorder %s33, 2
      %s35 = scalar_select %p34, 0, %s33
      %s36 = ssub.s32 %s23, %s35
      %p37 = scmp.eq.s32.totalorder %s36, 0
      %s39 = sadd.s32 %s38, 1
      %s40 = scalar_select %p37, %s38, %s39
      %p43 = pneg %p37
      %p44 = scmp.eq.s32.totalorder %s16, 1
      %p45 = por %p43, %p44
      %p46 = scmp.ne.s32.totalorder %s38, %s41
      %p47 = scmp.eq.s32.totalorder %s16, 0
      %p48 = por %p46, %p47
      %p49 = scmp.ne.s32.totalorder %s38, %s41
      %p50 = scmp.eq.s32.totalorder %s21, 1
      %p51 = por %p49, %p50
      %p52 = scmp.ne.s32.totalorder %s41, %s42
      %p53 = scmp.eq.s32.totalorder %s21, 0
      %p54 = por %p52, %p53
      %p55 = scmp.ne.s32.totalorder %s41, %s42
      %p56 = scmp.eq.s32.totalorder %s22, 1
      %p57 = por %p55, %p56
      %p59 = scmp.ne.s32.totalorder %s42, %s58
      %p60 = scmp.eq.s32.totalorder %s22, 0
      %p61 = por %p59, %p60
      %s62 = ssub.s32 %s24, %s31
      %p63 = scmp.eq.s32.totalorder %s62, 0
      %s65 = sadd.s32 %s64, 1
      %s66 = scalar_select %p63, %s64, %s65
      %p69 = pneg %p63
      %p70 = scmp.eq.s32.totalorder %s16, 1
      %p71 = por %p69, %p70
      %p72 = scmp.ne.s32.totalorder %s64, %s67
      %p73 = scmp.eq.s32.totalorder %s16, 0
      %p74 = por %p72, %p73
      %p75 = scmp.ne.s32.totalorder %s64, %s67
      %p76 = scmp.eq.s32.totalorder %s21, 1
      %p77 = por %p75, %p76
      %p78 = scmp.ne.s32.totalorder %s67, %s68
      %p79 = scmp.eq.s32.totalorder %s21, 0
      %p80 = por %p78, %p79
      %p81 = scmp.ne.s32.totalorder %s67, %s68
      %p82 = scmp.eq.s32.totalorder %s22, 1
      %p83 = por %p81, %p82
      %p85 = scmp.ne.s32.totalorder %s68, %s84
      %p86 = scmp.eq.s32.totalorder %s22, 0
      %p87 = por %p85, %p86
      %s88 = ssub.s32 %s24, %s31
      %p89 = scmp.eq.s32.totalorder %s88, 0
      %s91 = sadd.s32 %s90, 1
      %s92 = scalar_select %p89, %s90, %s91
      %p95 = pneg %p89
      %p96 = scmp.eq.s32.totalorder %s16, 1
      %p97 = por %p95, %p96
      %p98 = scmp.ne.s32.totalorder %s90, %s93
      %p99 = scmp.eq.s32.totalorder %s16, 0
      %p100 = por %p98, %p99
      %p101 = scmp.ne.s32.totalorder %s90, %s93
      %p102 = scmp.eq.s32.totalorder %s21, 1
      %p103 = por %p101, %p102
      %p104 = scmp.ne.s32.totalorder %s93, %s94
      %p105 = scmp.eq.s32.totalorder %s21, 0
      %p106 = por %p104, %p105
      %p107 = scmp.ne.s32.totalorder %s93, %s94
      %p108 = scmp.eq.s32.totalorder %s22, 1
      %p109 = por %p107, %p108
      %p111 = scmp.ne.s32.totalorder %s94, %s110
      %p112 = scmp.eq.s32.totalorder %s22, 0
      %p113 = por %p111, %p112
      %s114 = ssub.s32 %s24, %s31
      %p115 = scmp.eq.s32.totalorder %s114, 0
      %s117 = sadd.s32 %s116, 1
      %s118 = scalar_select %p115, %s116, %s117
      %p121 = pneg %p115
      %p122 = scmp.eq.s32.totalorder %s16, 1
      %p123 = por %p121, %p122
      %p124 = scmp.ne.s32.totalorder %s116, %s119
      %p125 = scmp.eq.s32.totalorder %s16, 0
      %p126 = por %p124, %p125
      %p127 = scmp.ne.s32.totalorder %s116, %s119
      %p128 = scmp.eq.s32.totalorder %s21, 1
      %p129 = por %p127, %p128
      %p130 = scmp.ne.s32.totalorder %s119, %s120
      %p131 = scmp.eq.s32.totalorder %s21, 0
      %p132 = por %p130, %p131
      %p133 = scmp.ne.s32.totalorder %s119, %s120
      %p134 = scmp.eq.s32.totalorder %s22, 1
      %p135 = por %p133, %p134
      %p137 = scmp.ne.s32.totalorder %s120, %s136
      %p138 = scmp.eq.s32.totalorder %s22, 0
      %p139 = por %p137, %p138
      %s141 = sadd.s32 %s140, 1
      %p144 = scmp.eq.s32.totalorder %s16, 1
      %p145 = scmp.ne.s32.totalorder %s140, %s142
      %p146 = scmp.eq.s32.totalorder %s16, 0
      %p147 = por %p145, %p146
      %p148 = scmp.ne.s32.totalorder %s140, %s142
      %p149 = scmp.eq.s32.totalorder %s21, 1
      %p150 = por %p148, %p149
      %p151 = scmp.ne.s32.totalorder %s142, %s143
      %p152 = scmp.eq.s32.totalorder %s21, 0
      %p153 = por %p151, %p152
      %p154 = scmp.ne.s32.totalorder %s142, %s143
      %p155 = scmp.eq.s32.totalorder %s22, 1
      %p156 = por %p154, %p155
      %p158 = scmp.ne.s32.totalorder %s143, %s157
      %p159 = scmp.eq.s32.totalorder %s22, 0
      %p160 = por %p158, %p159
      %s162 = sadd.s32 %s161, 1
      %p165 = scmp.eq.s32.totalorder %s16, 1
      %p166 = scmp.ne.s32.totalorder %s161, %s163
      %p167 = scmp.eq.s32.totalorder %s16, 0
      %p168 = por %p166, %p167
      %p169 = scmp.ne.s32.totalorder %s161, %s163
      %p170 = scmp.eq.s32.totalorder %s21, 1
      %p171 = por %p169, %p170
      %p172 = scmp.ne.s32.totalorder %s163, %s164
      %p173 = scmp.eq.s32.totalorder %s21, 0
      %p174 = por %p172, %p173
      %p175 = scmp.ne.s32.totalorder %s163, %s164
      %p176 = scmp.eq.s32.totalorder %s22, 1
      %p177 = por %p175, %p176
      %p179 = scmp.ne.s32.totalorder %s164, %s178
      %p180 = scmp.eq.s32.totalorder %s22, 0
      %p181 = por %p179, %p180
      %s183 = sadd.s32 %s182, 1
      %p186 = scmp.eq.s32.totalorder %s16, 1
      %p187 = scmp.ne.s32.totalorder %s182, %s184
      %p188 = scmp.eq.s32.totalorder %s16, 0
      %p189 = por %p187, %p188
      %p190 = scmp.ne.s32.totalorder %s182, %s184
      %p191 = scmp.eq.s32.totalorder %s21, 1
      %p192 = por %p190, %p191
      %p193 = scmp.ne.s32.totalorder %s184, %s185
      %p194 = scmp.eq.s32.totalorder %s21, 0
      %p195 = por %p193, %p194
      %p196 = scmp.ne.s32.totalorder %s184, %s185
      %p197 = scmp.eq.s32.totalorder %s22, 1
      %p198 = por %p196, %p197
      %p200 = scmp.ne.s32.totalorder %s185, %s199
      %p201 = scmp.eq.s32.totalorder %s22, 0
      %p202 = por %p200, %p201
      %s203 = ssub.s32 %s23, %s35
      %p204 = scmp.eq.s32.totalorder %s203, 0
      %s206 = sadd.s32 %s205, 1
      %s207 = scalar_select %p204, %s205, %s206
      %p210 = pneg %p204
      %p211 = scmp.eq.s32.totalorder %s16, 1
      %p212 = por %p210, %p211
      %p213 = scmp.ne.s32.totalorder %s205, %s208
      %p214 = scmp.eq.s32.totalorder %s16, 0
      %p215 = por %p213, %p214
      %p216 = scmp.ne.s32.totalorder %s205, %s208
      %p217 = scmp.eq.s32.totalorder %s21, 1
      %p218 = por %p216, %p217
      %p219 = scmp.ne.s32.totalorder %s208, %s209
      %p220 = scmp.eq.s32.totalorder %s21, 0
      %p221 = por %p219, %p220
      %p222 = scmp.ne.s32.totalorder %s208, %s209
      %p223 = scmp.eq.s32.totalorder %s22, 1
      %p224 = por %p222, %p223
      %p226 = scmp.ne.s32.totalorder %s209, %s225
      %p227 = scmp.eq.s32.totalorder %s22, 0
      %p228 = por %p226, %p227
      %p229 = scmp.le.s32.totalorder 1, %s16
      %p230 = scmp.lt.s32.totalorder %s16, 3
      %p231 = pnand %p229, %p230
      %p232 = pneg %p231
      // Predicated region
      $region9: #{tpu_custom_call.1} parent=5 // pred_check
        _
      $region10: #{tpu_custom_call.1} parent=5 // pred_check_branch
        %234 = sbr.rel (%p231) target = $region12
      $region11: #{tpu_custom_call.1} parent=5 // pred_region
        %s235 = ssub.s32 %s16, 1
        // Predicated region
        $region13: #{tpu_custom_call.1} parent=11 // pred_check
          %p236 = pneg %p80
        $region14: #{tpu_custom_call.1} parent=11 // pred_check_branch
          %238 = sbr.rel (%p236) target = $region16
        $region15: #{tpu_custom_call.1} parent=11 // pred_region
          %p239 = scmp.lt.s32.totalorder %s26, 0
          %s240 = scalar_select %p239, %s26, 0
          %s241 = smul.addr %s240, 8
          %s242 = scalar_lea.vmem %s1, %s241
        $region16: #{tpu_custom_call.1} parent=11 // pred_fallthru
          _
        // Predicated region
        $region17: #{tpu_custom_call.1} parent=11 // pred_check
          %p243 = pneg %p106
        $region18: #{tpu_custom_call.1} parent=11 // pred_check_branch
          %245 = sbr.rel (%p243) target = $region20
        $region19: #{tpu_custom_call.1} parent=11 // pred_region
          %p246 = scmp.lt.s32.totalorder %s26, 0
          %s247 = scalar_select %p246, %s26, 0
          %s248 = scalar_lea.vmem %s2, %s247
        $region20: #{tpu_custom_call.1} parent=11 // pred_fallthru
          _
        // Predicated region
        $region21: #{tpu_custom_call.1} parent=11 // pred_check
          %p249 = pneg %p132
        $region22: #{tpu_custom_call.1} parent=11 // pred_check_branch
          %251 = sbr.rel (%p249) target = $region24
        $region23: #{tpu_custom_call.1} parent=11 // pred_region
          %s252 = smul.u32 8, %s26
          %p253 = scmp.lt.s32.totalorder %s252, 7
          %s254 = scalar_select %p253, %s252, 7
          %s255 = smul.addr %s254, 8
          %s256 = scalar_lea.vmem %s3, %s255
          %s257 = smul.u32 8, %s26
        $region24: #{tpu_custom_call.1} parent=11 // pred_fallthru
          _
        // Predicated region
        $region25: #{tpu_custom_call.1} parent=11 // pred_check
          %p258 = pneg %p153
        $region26: #{tpu_custom_call.1} parent=11 // pred_check_branch
          %260 = sbr.rel (%p258) target = $region28
        $region27: #{tpu_custom_call.1} parent=11 // pred_region
          _
        $region28: #{tpu_custom_call.1} parent=11 // pred_fallthru
          _
        // Predicated region
        $region29: #{tpu_custom_call.1} parent=11 // pred_check
          %p261 = pneg %p174
        $region30: #{tpu_custom_call.1} parent=11 // pred_check_branch
          %263 = sbr.rel (%p261) target = $region32
        $region31: #{tpu_custom_call.1} parent=11 // pred_region
          _
        $region32: #{tpu_custom_call.1} parent=11 // pred_fallthru
          _
        // Predicated region
        $region33: #{tpu_custom_call.1} parent=11 // pred_check
          %p264 = pneg %p195
        $region34: #{tpu_custom_call.1} parent=11 // pred_check_branch
          %266 = sbr.rel (%p264) target = $region36
        $region35: #{tpu_custom_call.1} parent=11 // pred_region
          _
        $region36: #{tpu_custom_call.1} parent=11 // pred_fallthru
          _
      $region12: #{tpu_custom_call.1} parent=5 // pred_fallthru
        _
      %p267 = scmp.lt.s32.totalorder %s16, 2
      // Predicated region
      $region37: #{tpu_custom_call.1} parent=5 // pred_check
        %p268 = pneg %p267
      $region38: #{tpu_custom_call.1} parent=5 // pred_check_branch
        %270 = sbr.rel (%p268) target = $region40
      $region39: #{tpu_custom_call.1} parent=5 // pred_region
        // Predicated region
        $region41: #{tpu_custom_call.1} parent=39 // pred_check
          %p271 = pneg %p48
        $region42: #{tpu_custom_call.1} parent=39 // pred_check_branch
          %273 = sbr.rel (%p271) target = $region44
        $region43: #{tpu_custom_call.1} parent=39 // pred_region
          %p274 = scmp.lt.s32.totalorder %s23, 1
          %s275 = scalar_select %p274, %s23, 1
          %s276 = smul.addr %s275, 8
          %s277 = scalar_lea.vmem %s0, %s276
        $region44: #{tpu_custom_call.1} parent=39 // pred_fallthru
          _
      $region40: #{tpu_custom_call.1} parent=5 // pred_fallthru
        _
      %p278 = scmp.le.s32.totalorder 1, %s16
      %p279 = scmp.lt.s32.totalorder %s16, 3
      %p280 = pnand %p278, %p279
      %p281 = pneg %p280
      // Predicated region
      $region45: #{tpu_custom_call.1} parent=5 // pred_check
        _
      $region46: #{tpu_custom_call.1} parent=5 // pred_check_branch
        %283 = sbr.rel (%p280) target = $region48
      $region47: #{tpu_custom_call.1} parent=5 // pred_region
        %s284 = ssub.s32 %s16, 1
        %p285 = scmp.lt.s32.totalorder %s25, 1
        %s286 = scalar_select %p285, %s25, 1
        %s287 = smul.addr %s286, 8
        %s288 = scalar_lea.vmem %s0, %s287
        %p289 = pneg %p54
        %p290 = pneg %p51
        %p291 = scmp.lt.s32.totalorder %s26, 0
        %s292 = scalar_select %p291, %s26, 0
        %s293 = smul.addr %s292, 8
        %s294 = scalar_lea.vmem %s1, %s293
        %p295 = pneg %p80
        %p296 = pneg %p77
        %p297 = scmp.lt.s32.totalorder %s26, 0
        %s298 = scalar_select %p297, %s26, 0
        %s299 = scalar_lea.vmem %s2, %s298
        %p300 = pneg %p106
        %p301 = pneg %p103
        %s302 = smul.u32 8, %s26
        %p303 = scmp.lt.s32.totalorder %s302, 7
        %s304 = scalar_select %p303, %s302, 7
        %s305 = smul.addr %s304, 8
        %s306 = scalar_lea.vmem %s3, %s305
        %p307 = pneg %p132
        %p308 = pneg %p129
        %p309 = pneg %p153
        %p310 = pneg %p150
        %p311 = pneg %p174
        %p312 = pneg %p171
        %p313 = pneg %p195
        %p314 = pneg %p192
        %p315 = pneg %p221
        %p316 = pneg %p218
        %s317 = sand.u32 %s208, 1
        %s318 = scalar_lea.sflag [#allocation4], %s317
        %s319 = sand.u32 %s208, 1
        %s320 = smul.addr %s319, 8
        %s321 = scalar_lea.vmem [#allocation3], %s320
        %p322 = scmp.lt.s32.totalorder %s25, 1
        %s323 = scalar_select %p322, %s25, 1
        %s324 = smul.addr %s323, 8
        %s325 = scalar_lea.vmem %s0, %s324
        %p326 = scmp.lt.s32.totalorder %s26, 0
        %s327 = scalar_select %p326, %s26, 0
        %s328 = smul.addr %s327, 8
        %s329 = scalar_lea.vmem %s1, %s328
        %p330 = scmp.lt.s32.totalorder %s26, 0
        %s331 = scalar_select %p330, %s26, 0
        %s332 = scalar_lea.vmem %s2, %s331
        %s333 = smul.u32 8, %s26
        %p334 = scmp.lt.s32.totalorder %s333, 7
        %s335 = scalar_select %p334, %s333, 7
        %s336 = smul.addr %s335, 8
        %s337 = scalar_lea.vmem %s3, %s336
        %s338 = smul.u32 8, %s26
        %p339 = scmp.eq.s32.totalorder %s26, 0
        // Predicated region
        $region49: #{tpu_custom_call.1} parent=47 // pred_check
          %p340 = pneg %p339
        $region50: #{tpu_custom_call.1} parent=47 // pred_check_branch
          %342 = sbr.rel (%p340) target = $region52
        $region51: #{tpu_custom_call.1} parent=47 // pred_region
          %vm343 = vcmask 261120
          %344 = vst.msk [vmem:[#allocation2] sm:$0xff] %vm343, 0.0
        $region52: #{tpu_custom_call.1} parent=47 // pred_fallthru
          _
        %v345 = vld [vmem:[%s325] sm:$0xff]
        %v346 = vld [vmem:[%s329] sm:$0xff]
        %v347 = vld [vmem:[%s329 + $0x8] sm:$0xff]
        %v348 = vld [vmem:[%s329 + $0x10] sm:$0xff]
        %v349 = vld [vmem:[%s329 + $0x18] sm:$0xff]
        %v350 = vld [vmem:[%s332] sm:$0x1]
        %v352 = vperm.slane %v350, 0
        %vm354 = vcmask 261120
        %v356 = vsel %vm354, %v345, 0
        %358 = vmatpush.msra.mxu0 0.0
        %359 = vmatpush.msra.mxu0 0.0
        %360 = vmatpush.msra.mxu0 0.0
        %361 = vmatpush.msra.mxu0 0.0
        %362 = vmatpush.msra.mxu0 0.0
        %363 = vmatpush.msra.mxu0 0.0
        %364 = vmatpush.msra.mxu0 0.0
        %365 = vmatpush.msra.mxu0 0.0
        %366 = vmatpush.msra.mxu0 0.0
        %367 = vmatpush.msra.mxu0 0.0
        %368 = vmatpush.msra.mxu0 0.0
        %369 = vmatpush.msra.mxu0 0.0
        %370 = vmatpush.msra.mxu0 %v349
        %371 = vmatpush.msra.mxu0 %v348
        %372 = vmatpush.msra.mxu0 %v347
        %373 = vmatpush.msra.mxu0 %v346
        %374 = vmatmul.f32.gmra.mxu0 %v356
        %v375 = vpop.f32.mrf.mxu0
        %v376 = vadd.f32 %v352, %v375
        %377 = vdwg.mxu0
        %v378 = vmax.f32 %v376, 0.0
        %v379 = vld [vmem:[#allocation2] sm:$0xff]
        %v380 = vld [vmem:[%s337] sm:$0xff]
        %v381 = vld [vmem:[%s337 + $0x8] sm:$0xff]
        %v382 = vld [vmem:[%s337 + $0x10] sm:$0xff]
        %v383 = vld [vmem:[%s337 + $0x18] sm:$0xff]
        %v384 = vld [vmem:[%s337 + $0x20] sm:$0xff]
        %v385 = vld [vmem:[%s337 + $0x28] sm:$0xff]
        %v386 = vld [vmem:[%s337 + $0x30] sm:$0xff]
        %v387 = vld [vmem:[%s337 + $0x38] sm:$0xff]
        %vm388 = vcmask 523264
        %v390 = vsel %vm388, %v378, 0
        %392 = vmatpush.msra.mxu0 0.0
        %393 = vmatpush.msra.mxu0 0.0
        %394 = vmatpush.msra.mxu0 0.0
        %395 = vmatpush.msra.mxu0 0.0
        %396 = vmatpush.msra.mxu0 0.0
        %397 = vmatpush.msra.mxu0 0.0
        %398 = vmatpush.msra.mxu0 0.0
        %399 = vmatpush.msra.mxu0 0.0
        %400 = vmatpush.msra.mxu0 %v387
        %401 = vmatpush.msra.mxu0 %v386
        %402 = vmatpush.msra.mxu0 %v385
        %403 = vmatpush.msra.mxu0 %v384
        %404 = vmatpush.msra.mxu0 %v383
        %405 = vmatpush.msra.mxu0 %v382
        %406 = vmatpush.msra.mxu0 %v381
        %407 = vmatpush.msra.mxu0 %v380
        %408 = vmatmul.f32.gmra.mxu0 %v390
        %v409 = vpop.f32.mrf.mxu0
        %v410 = vadd.f32 0.0, %v409
        %411 = vdwg.mxu0
        %v412 = vadd.f32 %v379, %v410
        %413 = vst.msk [vmem:[#allocation2] sm:$0xff] %vm354, %v412
        // Predicated region
        $region53: #{tpu_custom_call.1} parent=47 // pred_check
          %p414 = pneg %p339
        $region54: #{tpu_custom_call.1} parent=47 // pred_check_branch
          %416 = sbr.rel (%p414) target = $region56
        $region55: #{tpu_custom_call.1} parent=47 // pred_region
          %v417 = vld [vmem:[#allocation2] sm:$0xff]
          %v418 = vld [vmem:[%s4] sm:$0x1]
          %v420 = vperm.slane %v418, 0
          %v422 = vadd.f32 %v417, %v420
          %v423 = vld [vmem:[%s325] sm:$0xff]
          %v424 = vadd.f32 %v422, %v423
          %v425 = vsel %vm354, %v424, 0.0
          %426 = vadd.xlane.f32.xlu0 %v425
          %v427 = vpop.xlane.xlu0 %426
          %v428 = vrcp.pop 32.0
          %v429 = vmul.f32 32.0, %v428
          %v430 = vsub.f32 1.0, %v429
          %v431 = vmul.f32 %v428, %v430
          %v432 = vadd.f32 %v428, %v431
          %vm433 = vweird.f32 %v428
          %v434 = vsel %vm433, %v428, %v432
          %v435 = vmul.f32 %v427, %v434
          %v436 = vsub.f32 %v424, %v435
          %v437 = vmul.f32 %v436, %v436
          %v438 = vsel %vm354, %v437, 0.0
          %439 = vadd.xlane.f32.xlu0 %v438
          %v440 = vpop.xlane.xlu0 %439
          %v441 = vmul.f32 %v440, %v434
          %v442 = vadd.f32 %v441, 1e-05
          %v443 = vrsqrt.pop %v442
          %v444 = vmul.f32 %v443, %v442
          %v445 = vmul.f32 %v444, %v443
          %v446 = vmul.f32 0.5, %v445
          %v447 = vsub.f32 1.5, %v446
          %v448 = vmul.f32 %v443, %v447
          %vm449 = vweird.f32 %v442
          %vm450 = vweird.f32 %v443
          %vm451 = vmor %vm449, %vm450
          %v452 = vsel %vm451, %v443, %v448
          %v453 = vmul.f32 %v436, %v452
          %v454 = vld [vmem:[%s5] sm:$0x1]
          %v456 = vperm.slane %v454, 0
          %v458 = vmul.f32 %v453, %v456
          %v459 = vld [vmem:[%s6] sm:$0x1]
          %v461 = vperm.slane %v459, 0
          %v463 = vadd.f32 %v458, %v461
          %464 = vst.msk [vmem:[%s321] sm:$0xff] %vm354, %v463
        $region56: #{tpu_custom_call.1} parent=47 // pred_fallthru
          _
        %s465 = sand.u32 %s208, 1
        %s466 = scalar_lea.sflag [#allocation4], %s465
        %s467 = sand.u32 %s208, 1
        %s468 = smul.addr %s467, 8
        %s469 = scalar_lea.vmem [#allocation3], %s468
        // Predicated region
        $region57: #{tpu_custom_call.1} parent=47 // pred_check
          %p470 = pneg %p218
        $region58: #{tpu_custom_call.1} parent=47 // pred_check_branch
          %472 = sbr.rel (%p470) target = $region60
        $region59: #{tpu_custom_call.1} parent=47 // pred_region
          %474 = vsyncadd %s466, 0
          %s475 = smul.addr %s25, 8
          %s476 = scalar_lea.hbm %s7, %s475
          %s478 = sshll.u32 %s469, 4
          %s479 = int_to_ptr.vmem [resolvable:$true] %s478
          %s480 = sshll.u32 %s476, 4
          %s481 = int_to_ptr.hbm [resolvable:$true] %s480
          %483 = dma.vmem_to_hbm [thread:$0]  %s479, 128, %s481, %s466
        $region60: #{tpu_custom_call.1} parent=47 // pred_fallthru
          _
      $region48: #{tpu_custom_call.1} parent=5 // pred_fallthru
        _
      %p484 = scmp.le.s32.totalorder 2, %s16
      // Predicated region
      $region61: #{tpu_custom_call.1} parent=5 // pred_check
        %p485 = pneg %p484
      $region62: #{tpu_custom_call.1} parent=5 // pred_check_branch
        %487 = sbr.rel (%p485) target = $region64
      $region63: #{tpu_custom_call.1} parent=5 // pred_region
        %s488 = ssub.s32 %s16, 2
        // Predicated region
        $region65: #{tpu_custom_call.1} parent=63 // pred_check
          %p489 = pneg %p224
        $region66: #{tpu_custom_call.1} parent=63 // pred_check_branch
          %491 = sbr.rel (%p489) target = $region68
        $region67: #{tpu_custom_call.1} parent=63 // pred_region
          %s492 = sand.u32 %s209, 1
          %s493 = scalar_lea.sflag [#allocation4], %s492
          %s494 = sand.u32 %s209, 1
          %s495 = smul.addr %s494, 8
          %s496 = scalar_lea.vmem [#allocation3], %s495
          %498 = dma.done %s493, 128
        $region68: #{tpu_custom_call.1} parent=63 // pred_fallthru
          _
      $region64: #{tpu_custom_call.1} parent=5 // pred_fallthru
        _
    $region6: #{tpu_custom_call.1} parent=1 // loop_footer
      %s20 = sadd.s32 1, %s16
    $region7: #{tpu_custom_call.1} parent=1 // loop_footer_branch
      %15 = sbr.rel target = $region3
    $region8: #{tpu_custom_call.1} parent=1 // loop_exit
      _
    %499 = vsyncpa [#allocation4], 1
    %s500 = scalar_lea.sflag [#allocation4], 1
    %501 = vsyncpa %s500, 1

</llo_original>
